<compile_context>
chip_gen: v7x
topology: tpu7x:2x2x1
jax: 0.10.0
libtpu: 0.0.40
codegen_flags: <defaults>
</compile_context>

<pallas_src>
import functools

import jax
import jax.numpy as jnp
from jax.experimental import pallas as pl
from jax.experimental.pallas import tpu as pltpu


def _round_up(x, m):
    return ((x + m - 1) // m) * m


def _vmem_budget_bytes():
    """Per-core VMEM budget with headroom; never exceeds physical capacity."""
    try:
        cap = int(pltpu.get_tpu_info().vmem_capacity_bytes)
    except Exception:
        cap = 64 * 1024 * 1024  # conservative: v7x per-TensorCore VMEM
    return max(cap - 8 * 1024 * 1024, 16 * 1024 * 1024)


# --------------------------------------------------------------------------
# Kernels
# --------------------------------------------------------------------------
def _crossnet_resident_kernel(x0_ref, w_ref, b_ref, out_ref, *, num_layers):
    """All layers for one batch tile; weights resident in VMEM (Buffered(1)).

    x0_ref : (TB, Dp)       input tile (lane-padded)
    w_ref  : (L, Dp, Dp)    per-layer weights, (in, out) layout, f32 or bf16
    b_ref  : (L, Dp)        per-layer biases, f32, with the residual '+1' folded in
    out_ref: (TB, Dp)
    """
    xi = x0_ref[...].astype(jnp.float32)
    # Static unroll: num_layers is a small compile-time constant on this path.
    for i in range(num_layers):
        # Re-read x0 from VMEM each layer (3 vld/cycle) instead of pinning it
        # in vregs across the unrolled loop -> bounds register pressure.
        x0 = x0_ref[...].astype(jnp.float32)
        y = jnp.dot(xi.astype(w_ref.dtype), w_ref[i],
                    preferred_element_type=jnp.float32) + b_ref[i]
        # Fused residuals: xi + x0*y' + x0 == xi + x0*(y'+1); '+1' is in the bias.
        xi = xi + x0 * y
    out_ref[...] = xi.astype(out_ref.dtype)


def _crossnet_streamed_kernel(x0_ref, w_ref, b_ref, out_ref, xi_ref):
    """One (batch-tile, layer) grid step; weights streamed per layer.

    Grid = (num_batch_tiles, num_layers), layer axis innermost ("arbitrary").
    x0_ref : (TB, Dp)      constant across the layer axis (DMA'd once per tile)
    w_ref  : (1, Dp, Dp)   layer `l` weight block (double-buffered by pipeline)
    b_ref  : (1, 1, Dp)    layer `l` bias (with '+1' folded in)
    out_ref: (TB, Dp)      written only at the last layer
    xi_ref : (TB, Dp) f32  VMEM scratch carrying X_i across layers
    """
    layer = pl.program_id(1)

    @pl.when(layer == 0)
    def _():
        xi_ref[...] = x0_ref[...].astype(jnp.float32)

    xi = xi_ref[...]
    x0 = x0_ref[...].astype(jnp.float32)
    y = jnp.dot(xi.astype(w_ref.dtype), w_ref[0],
                preferred_element_type=jnp.float32) + b_ref[0]
    xi = xi + x0 * y
    xi_ref[...] = xi

    @pl.when(layer == pl.num_programs(1) - 1)
    def _():
        out_ref[...] = xi.astype(out_ref.dtype)


# --------------------------------------------------------------------------
# Host-side parameter preparation (do ONCE, cache, reuse across calls)
# --------------------------------------------------------------------------
def prepare_crossnet_params(weights, biases, *, weight_dtype=jnp.bfloat16):
    """Pad / transpose / cast the layer parameters once.

    weights : (L, D, D) in PyTorch nn.Linear layout (out_features, in_features)
    biases  : (L, D)
    Returns:
      w_p : (L, Dp, Dp) weights in (in, out) layout, cast to `weight_dtype`
      b_p : (L, Dp) f32 biases with the residual '+1' folded in (padded lanes 0)
    Padded lanes stay exactly 0 through every layer because x0's padded lanes
    are 0 and W's padded rows/cols are 0.
    """
    L, d_out, d_in = weights.shape
    assert d_out == d_in and biases.shape == (L, d_out)
    D = d_in
    Dp = _round_up(D, 128)
    w_t = jnp.swapaxes(weights, -1, -2)                               # (L, in, out)
    w_p = jnp.pad(w_t, ((0, 0), (0, Dp - D), (0, Dp - D))).astype(weight_dtype)
    b_p = jnp.pad(biases.astype(jnp.float32) + 1.0, ((0, 0), (0, Dp - D)))
    return w_p, b_p


def _plan(B, Dp, L, w_itemsize, block_batch, budget, force_mode=None):
    """Choose (mode, batch_tile, estimated_vmem_bytes) that fits `budget`."""
    tb_max = _round_up(min(block_batch, _round_up(B, 8)), 8)
    candidates = []
    t = tb_max
    while t > 8:
        candidates.append(t)
        t = _round_up(t // 2, 8)
    candidates.append(8)

    def bytes_needed(mode, tb):
        tiles = 2 * (2 * tb * Dp * 4)            # x0 + out tiles, double-buffered f32
        temps = 4 * tb * Dp * 4                  # live f32 temporaries (xi, x0, y, slack)
        if mode == "resident":
            weights = L * Dp * Dp * w_itemsize + L * Dp * 4    # Buffered(1)
            scratch = 0
        else:
            weights = 2 * (Dp * Dp * w_itemsize + Dp * 4)      # per-layer, Buffered(2)
            scratch = tb * Dp * 4                               # xi scratch
        return tiles + temps + weights + scratch

    modes = [force_mode] if force_mode is not None else ["resident", "streamed"]
    for mode in modes:
        for tb in candidates:
            need = bytes_needed(mode, tb)
            if need <= budget:
                return mode, tb, need
    mode = force_mode if force_mode is not None else "streamed"
    return mode, 8, bytes_needed(mode, 8)


# --------------------------------------------------------------------------
# Wrapper
# --------------------------------------------------------------------------
def crossnet_v2(x0, w_p, b_p, *, block_batch=512, force_mode=None):
    """CrossNetV2 forward.

    x0  : (B, D) float32
    w_p : (L, Dp, Dp) prepared weights (see prepare_crossnet_params)
    b_p : (L, Dp) prepared biases ('+1' folded in)
    """
    L, Dp, Dp2 = w_p.shape
    B, D = x0.shape
    assert Dp == Dp2 and b_p.shape == (L, Dp) and D <= Dp

    budget = _vmem_budget_bytes()
    mode, TB, required = _plan(B, Dp, L, w_p.dtype.itemsize, block_batch,
                               budget, force_mode=force_mode)
    Bp = _round_up(B, TB)
    # (At production sizes, pick B a multiple of TB so pad/slice are no-ops and
    #  the batch grid has >=2 steps for megacore sharding.)
    x0_p = jnp.pad(x0, ((0, Bp - B), (0, Dp - D)))

    vmem_limit = int(min(budget, max(2 * required, 32 * 1024 * 1024)))

    # TODO(synk): on v7x, if an xprof trace shows only one TensorCore busy,
    # switch the batch axis to pltpu.CORE_PARALLEL (weights replicate per-TC).
    if mode == "resident":
        kernel = functools.partial(_crossnet_resident_kernel, num_layers=L)
        out_p = pl.pallas_call(
            kernel,
            out_shape=jax.ShapeDtypeStruct((Bp, Dp), x0.dtype),
            grid=(Bp // TB,),
            in_specs=[
                # Batch-tiled input, pipelined against compute across the grid.
                pl.BlockSpec((TB, Dp), lambda i: (i, 0)),
                # Grid-invariant weights/biases: one pipeline buffer, DMA'd once.
                pl.BlockSpec((L, Dp, Dp), lambda i: (0, 0, 0),
                             pipeline_mode=pl.Buffered(1)),
                pl.BlockSpec((L, Dp), lambda i: (0, 0),
                             pipeline_mode=pl.Buffered(1)),
            ],
            out_specs=pl.BlockSpec((TB, Dp), lambda i: (i, 0)),
            compiler_params=pltpu.CompilerParams(
                dimension_semantics=("parallel",),
                vmem_limit_bytes=vmem_limit,
            ),
        )(x0_p, w_p, b_p)
    else:
        # Layer-streamed path: weights too large to keep resident in VMEM.
        b3 = b_p.reshape(L, 1, Dp)
        out_p = pl.pallas_call(
            _crossnet_streamed_kernel,
            out_shape=jax.ShapeDtypeStruct((Bp, Dp), x0.dtype),
            grid=(Bp // TB, L),
            in_specs=[
                pl.BlockSpec((TB, Dp), lambda i, l: (i, 0)),
                pl.BlockSpec((1, Dp, Dp), lambda i, l: (l, 0, 0)),
                pl.BlockSpec((1, 1, Dp), lambda i, l: (l, 0, 0)),
            ],
            out_specs=pl.BlockSpec((TB, Dp), lambda i, l: (i, 0)),
            scratch_shapes=[pltpu.VMEM((TB, Dp), jnp.float32)],
            compiler_params=pltpu.CompilerParams(
                dimension_semantics=("parallel", "arbitrary"),
                vmem_limit_bytes=vmem_limit,
            ),
        )(x0_p, w_p, b3)

    return out_p[:B, :D]


# --------------------------------------------------------------------------
# Pure-JAX reference (PyTorch layout: weight (out, in), y = x @ W^T + b)
# --------------------------------------------------------------------------
def crossnet_v2_reference(x0, weights, biases):
    xi = x0
    for i in range(weights.shape[0]):
        y = xi @ weights[i].T + biases[i]
        xi = xi + x0 * y
        xi = xi + x0
    return xi


if __name__ == "__main__":
    # Small shapes consistent with the module: batch=8, input_dim=32, 3 layers.
    batch, input_dim, num_layers = 8, 32, 3

    key = jax.random.PRNGKey(0)
    k_x, k_w, k_b = jax.random.split(key, 3)

    x0 = jax.random.normal(k_x, (batch, input_dim), dtype=jnp.float32)

    # PyTorch nn.Linear default init U(-1/sqrt(D), 1/sqrt(D)); weight is (out, in).
    bound = 1.0 / jnp.sqrt(jnp.float32(input_dim))
    weights = jax.random.uniform(
        k_w, (num_layers, input_dim, input_dim), dtype=jnp.float32,
        minval=-bound, maxval=bound)
    biases = jax.random.uniform(
        k_b, (num_layers, input_dim), dtype=jnp.float32,
        minval=-bound, maxval=bound)

    ref = crossnet_v2_reference(x0, weights, biases)

    # 1) f32 weights, resident-weight kernel (auto-selected at this size).
    w_f32, b_f32 = prepare_crossnet_params(weights, biases, weight_dtype=jnp.float32)
    out_res = jax.block_until_ready(crossnet_v2(x0, w_f32, b_f32))
    assert out_res.shape == (batch, input_dim)
    assert jnp.allclose(out_res, ref, atol=1e-4, rtol=1e-4), "resident f32 mismatch"

    # 2) f32 weights, forced layer-streamed kernel (the large-L*Dp^2 path).
    out_str = jax.block_until_ready(
        crossnet_v2(x0, w_f32, b_f32, force_mode="streamed"))
    assert jnp.allclose(out_str, ref, atol=1e-4, rtol=1e-4), "streamed f32 mismatch"

    # 3) bf16 weights (production default): MXU bf16 operands, f32 accumulation.
    #    Looser tolerance vs the f32 reference (accuracy/perf trade-off).
    w_bf16, b_bf16 = prepare_crossnet_params(weights, biases, weight_dtype=jnp.bfloat16)
    out_bf16 = jax.block_until_ready(crossnet_v2(x0, w_bf16, b_bf16))
    assert jnp.allclose(out_bf16, ref, atol=2e-1, rtol=5e-2), "bf16 mismatch vs f32 ref"

    print("KERNEL_OK")
</pallas_src>

<mosaic_0001>
module attributes {stable_mosaic.version = 11 : i64} {
  func.func @_crossnet_resident_kernel(%arg0: i32, %arg1: memref<8x128xf32, #tpu.memory_space<vmem>>, %arg2: memref<3x128x128xf32, #tpu.memory_space<vmem>>, %arg3: memref<3x128xf32, #tpu.memory_space<vmem>>, %arg4: memref<8x128xf32, #tpu.memory_space<vmem>>) attributes {dimension_semantics = [#tpu.dimension_semantics<parallel>], iteration_bounds = array<i64: 1>, scalar_prefetch = 0 : i64, scratch_operands = 0 : i64, tpu.core_type = #tpu.core_type<tc>, window_params = [{transform_indices = @transform_0, window_bounds = array<i64: 8, 128>}, {pipeline_mode = #tpu.pipeline_mode<synchronous>, transform_indices = @transform_1, window_bounds = array<i64: 3, 128, 128>}, {pipeline_mode = #tpu.pipeline_mode<synchronous>, transform_indices = @transform_2, window_bounds = array<i64: 3, 128>}, {transform_indices = @transform_3, window_bounds = array<i64: 8, 128>}]} {
    %c0 = arith.constant 0 : index
    %c0_0 = arith.constant 0 : index
    %0 = vector.load %arg1[%c0, %c0_0] : memref<8x128xf32, #tpu.memory_space<vmem>>, vector<8x128xf32>
    %c0_1 = arith.constant 0 : index
    %c0_2 = arith.constant 0 : index
    %1 = vector.load %arg1[%c0_1, %c0_2] : memref<8x128xf32, #tpu.memory_space<vmem>>, vector<8x128xf32>
    %c0_3 = arith.constant 0 : index
    %c0_4 = arith.constant 0 : index
    %c0_5 = arith.constant 0 : index
    %2 = vector.load %arg2[%c0_3, %c0_4, %c0_5] : memref<3x128x128xf32, #tpu.memory_space<vmem>>, vector<1x128x128xf32>
    %3 = vector.shape_cast %2 : vector<1x128x128xf32> to vector<128x128xf32>
    %cst = arith.constant dense<0.000000e+00> : vector<8x128xf32>
    %4 = tpu.matmul %0, %3, %cst {dimension_numbers = #tpu.dot_dimension_numbers<[1], [0], [0], [1], [0, 0, 1, 1], [], []>} : vector<8x128xf32>, vector<128x128xf32>, vector<8x128xf32> -> vector<8x128xf32>
    %c0_6 = arith.constant 0 : index
    %c0_7 = arith.constant 0 : index
    %5 = vector.load %arg3[%c0_6, %c0_7] : memref<3x128xf32, #tpu.memory_space<vmem>>, vector<1x128xf32>
    %6 = vector.shape_cast %5 : vector<1x128xf32> to vector<128xf32>
    %7 = vector.shape_cast %6 : vector<128xf32> to vector<1x128xf32>
    %8 = vector.broadcast %7 : vector<1x128xf32> to vector<8x128xf32>
    %9 = arith.addf %4, %8 : vector<8x128xf32>
    %10 = arith.mulf %1, %9 : vector<8x128xf32>
    %11 = arith.addf %0, %10 : vector<8x128xf32>
    %c0_8 = arith.constant 0 : index
    %c0_9 = arith.constant 0 : index
    %12 = vector.load %arg1[%c0_8, %c0_9] : memref<8x128xf32, #tpu.memory_space<vmem>>, vector<8x128xf32>
    %c1 = arith.constant 1 : index
    %c0_10 = arith.constant 0 : index
    %c0_11 = arith.constant 0 : index
    %13 = vector.load %arg2[%c1, %c0_10, %c0_11] : memref<3x128x128xf32, #tpu.memory_space<vmem>>, vector<1x128x128xf32>
    %14 = vector.shape_cast %13 : vector<1x128x128xf32> to vector<128x128xf32>
    %cst_12 = arith.constant dense<0.000000e+00> : vector<8x128xf32>
    %15 = tpu.matmul %11, %14, %cst_12 {dimension_numbers = #tpu.dot_dimension_numbers<[1], [0], [0], [1], [0, 0, 1, 1], [], []>} : vector<8x128xf32>, vector<128x128xf32>, vector<8x128xf32> -> vector<8x128xf32>
    %c1_13 = arith.constant 1 : index
    %c0_14 = arith.constant 0 : index
    %16 = vector.load %arg3[%c1_13, %c0_14] : memref<3x128xf32, #tpu.memory_space<vmem>>, vector<1x128xf32>
    %17 = vector.shape_cast %16 : vector<1x128xf32> to vector<128xf32>
    %18 = vector.shape_cast %17 : vector<128xf32> to vector<1x128xf32>
    %19 = vector.broadcast %18 : vector<1x128xf32> to vector<8x128xf32>
    %20 = arith.addf %15, %19 : vector<8x128xf32>
    %21 = arith.mulf %12, %20 : vector<8x128xf32>
    %22 = arith.addf %11, %21 : vector<8x128xf32>
    %c0_15 = arith.constant 0 : index
    %c0_16 = arith.constant 0 : index
    %23 = vector.load %arg1[%c0_15, %c0_16] : memref<8x128xf32, #tpu.memory_space<vmem>>, vector<8x128xf32>
    %c2 = arith.constant 2 : index
    %c0_17 = arith.constant 0 : index
    %c0_18 = arith.constant 0 : index
    %24 = vector.load %arg2[%c2, %c0_17, %c0_18] : memref<3x128x128xf32, #tpu.memory_space<vmem>>, vector<1x128x128xf32>
    %25 = vector.shape_cast %24 : vector<1x128x128xf32> to vector<128x128xf32>
    %cst_19 = arith.constant dense<0.000000e+00> : vector<8x128xf32>
    %26 = tpu.matmul %22, %25, %cst_19 {dimension_numbers = #tpu.dot_dimension_numbers<[1], [0], [0], [1], [0, 0, 1, 1], [], []>} : vector<8x128xf32>, vector<128x128xf32>, vector<8x128xf32> -> vector<8x128xf32>
    %c2_20 = arith.constant 2 : index
    %c0_21 = arith.constant 0 : index
    %27 = vector.load %arg3[%c2_20, %c0_21] : memref<3x128xf32, #tpu.memory_space<vmem>>, vector<1x128xf32>
    %28 = vector.shape_cast %27 : vector<1x128xf32> to vector<128xf32>
    %29 = vector.shape_cast %28 : vector<128xf32> to vector<1x128xf32>
    %30 = vector.broadcast %29 : vector<1x128xf32> to vector<8x128xf32>
    %31 = arith.addf %26, %30 : vector<8x128xf32>
    %32 = arith.mulf %23, %31 : vector<8x128xf32>
    %33 = arith.addf %22, %32 : vector<8x128xf32>
    %c0_22 = arith.constant 0 : index
    %c0_23 = arith.constant 0 : index
    %34 = vector.load %arg4[%c0_22, %c0_23] : memref<8x128xf32, #tpu.memory_space<vmem>>, vector<8x128xf32>
    tpu.vector_store %arg4[%c0_22, %c0_23], %33 {strides = array<i32>} : memref<8x128xf32, #tpu.memory_space<vmem>>, vector<8x128xf32>,
    return
  }
  func.func @transform_0(%arg0: i32) -> (i32, i32) {
    %c0_i32 = arith.constant 0 : i32
    %c0_i32_0 = arith.constant 0 : i32
    return %arg0, %c0_i32 : i32, i32
  }
  func.func @transform_1(%arg0: i32) -> (i32, i32, i32) {
    %c0_i32 = arith.constant 0 : i32
    %c0_i32_0 = arith.constant 0 : i32
    %c0_i32_1 = arith.constant 0 : i32
    %c0_i32_2 = arith.constant 0 : i32
    return %c0_i32, %c0_i32_0, %c0_i32_1 : i32, i32, i32
  }
  func.func @transform_2(%arg0: i32) -> (i32, i32) {
    %c0_i32 = arith.constant 0 : i32
    %c0_i32_0 = arith.constant 0 : i32
    %c0_i32_1 = arith.constant 0 : i32
    return %c0_i32, %c0_i32_0 : i32, i32
  }
  func.func @transform_3(%arg0: i32) -> (i32, i32) {
    %c0_i32 = arith.constant 0 : i32
    %c0_i32_0 = arith.constant 0 : i32
    return %arg0, %c0_i32 : i32, i32
  }
}

</mosaic_0001>

<llo_original>
// kernel: tpu_custom_call.1
$region0: #{tpu_custom_call.1}
  #allocation0 [shape = 'u32[]', space=smem, size = 0x4, offset = 0x4, fixed_abs, tag = 'smem constant byte address 0x4 - core index']
  #allocation1 [shape = 'u32[144,128]{1,0:T(1,128)}', space=vmem, size = 0x12000, scoped, tag = 'internal scratch']
  %s0 = inlined_call_operand.hbm [shape: f32[8,128], index: 0, kind: input, shape index: {}]
  %s1 = inlined_call_operand.hbm [shape: f32[3,128,128], index: 1, kind: input, shape index: {}]
  %s2 = inlined_call_operand.vmem [shape: f32[3,128], index: 2, kind: input, shape index: {}]
  %s3 = inlined_call_operand.hbm [shape: f32[8,128], index: 3, kind: output, shape index: {}]
  %s4 = sld [smem:[#allocation0]]
  $region30: #{tpu_custom_call.1} parent=0
    _
  %s6 = ssub.s32 1, %s4
  %s7 = scalar_select 0, %s6, %s4
  $region1: #{tpu_custom_call.1} parent=0
    #allocation2 [shape = 'u8[4096]{0}', space=vmem, size = 0x1000, scoped, tag = 'input window, operand 0, single buffered']
    #allocation3 [shape = 's32[1]{0}', space=sflag, size = 0x4, scoped, tag = 'scoped memory for tpu_custom_call.1']
    #allocation4 [shape = 's32[1]{0}', space=sflag, size = 0x4, scoped, tag = 'scoped memory for tpu_custom_call.1']
    #allocation5 [shape = 'u8[196608]{0}', space=vmem, size = 0x30000, scoped, tag = 'input window, operand 1, single buffered']
    #allocation6 [shape = 's32[1]{0}', space=sflag, size = 0x4, scoped, tag = 'scoped memory for tpu_custom_call.1']
    #allocation7 [shape = 'u8[4096]{0}', space=vmem, size = 0x1000, scoped, tag = 'output window, operand 0, single buffered']
    %8 = vsyncpa [#allocation3], 0
    %9 = vsyncpa [#allocation6], 0
    %10 = vsyncpa [#allocation4], 0
    // Predicated region
    $region2: #{tpu_custom_call.1} parent=1 // pred_check
      _
    $region3: #{tpu_custom_call.1} parent=1 // pred_check_branch
      %12 = sbr.rel (0) target = $region5
    $region4: #{tpu_custom_call.1} parent=1 // pred_region
      %s14 = ssub.s32 128, 128
      %15 = vsyncadd [#allocation3], %s14
      %s17 = sshll.u32 [#allocation2], 4
      %s18 = int_to_ptr.vmem [resolvable:$true] %s17
      %20 = dma.hbm_to_vmem [thread:$0]  %s0, 128, %s18, [#allocation3]
    $region5: #{tpu_custom_call.1} parent=1 // pred_fallthru
      _
    // Predicated region
    $region6: #{tpu_custom_call.1} parent=1 // pred_check
      _
    $region7: #{tpu_custom_call.1} parent=1 // pred_check_branch
      %22 = sbr.rel (0) target = $region9
    $region8: #{tpu_custom_call.1} parent=1 // pred_region
      %s24 = ssub.s32 6144, 6144
      %25 = vsyncadd [#allocation6], %s24
      %s26 = sshll.u32 [#allocation5], 4
      %s27 = int_to_ptr.vmem [resolvable:$true] %s26
      %32 = dma.hbm_to_vmem [thread:$0]  %s1, 6144, %s27, [#allocation6], 128, 128, 8
    $region9: #{tpu_custom_call.1} parent=1 // pred_fallthru
      _
    // Predicated region
    $region10: #{tpu_custom_call.1} parent=1 // pred_check
      _
    $region11: #{tpu_custom_call.1} parent=1 // pred_check_branch
      %34 = sbr.rel (0) target = $region13
    $region12: #{tpu_custom_call.1} parent=1 // pred_region
      _
    $region13: #{tpu_custom_call.1} parent=1 // pred_fallthru
      _
    // Predicated region
    $region14: #{tpu_custom_call.1} parent=1 // pred_check
      _
    $region15: #{tpu_custom_call.1} parent=1 // pred_check_branch
      %36 = sbr.rel (0) target = $region17
    $region16: #{tpu_custom_call.1} parent=1 // pred_region
      %37 = dma.done [#allocation3], 128
    $region17: #{tpu_custom_call.1} parent=1 // pred_fallthru
      _
    // Predicated region
    $region18: #{tpu_custom_call.1} parent=1 // pred_check
      _
    $region19: #{tpu_custom_call.1} parent=1 // pred_check_branch
      %39 = sbr.rel (0) target = $region21
    $region20: #{tpu_custom_call.1} parent=1 // pred_region
      %40 = dma.done [#allocation6], 6144
    $region21: #{tpu_custom_call.1} parent=1 // pred_fallthru
      _
    %v41 = vld [vmem:[#allocation2] sm:$0xff]
    %v42 = vld [vmem:[#allocation5] sm:$0xff]
    %v43 = vld [vmem:[#allocation5 + $0x8] sm:$0xff]
    %v44 = vld [vmem:[#allocation5 + $0x10] sm:$0xff]
    %v45 = vld [vmem:[#allocation5 + $0x18] sm:$0xff]
    %v46 = vld [vmem:[#allocation5 + $0x20] sm:$0xff]
    %v47 = vld [vmem:[#allocation5 + $0x28] sm:$0xff]
    %v48 = vld [vmem:[#allocation5 + $0x30] sm:$0xff]
    %v49 = vld [vmem:[#allocation5 + $0x38] sm:$0xff]
    %v50 = vld [vmem:[#allocation5 + $0x40] sm:$0xff]
    %v51 = vld [vmem:[#allocation5 + $0x48] sm:$0xff]
    %v52 = vld [vmem:[#allocation5 + $0x50] sm:$0xff]
    %v53 = vld [vmem:[#allocation5 + $0x58] sm:$0xff]
    %v54 = vld [vmem:[#allocation5 + $0x60] sm:$0xff]
    %v55 = vld [vmem:[#allocation5 + $0x68] sm:$0xff]
    %v56 = vld [vmem:[#allocation5 + $0x70] sm:$0xff]
    %v57 = vld [vmem:[#allocation5 + $0x78] sm:$0xff]
    %v58 = vld [vmem:[%s2] sm:$0x1]
    %v59 = vlaneseq
    %v60 = vshrl.u32 %v59, 7
    %v61 = vsub.s32 0, %v60
    %v62 = vrot.slane %v58, %v61
    %63 = vmatprep.subr.mxu0 0.0
    %64 = vmatpush1.msra.mxu0 %v42
    %65 = vmatprep.subr.mxu0 0.0
    %66 = vmatpush1.msra.mxu0 %v43
    %67 = vmatprep.subr.mxu0 0.0
    %68 = vmatpush1.msra.mxu0 %v44
    %69 = vmatprep.subr.mxu0 0.0
    %70 = vmatpush1.msra.mxu0 %v45
    %71 = vmatprep.subr.mxu0 0.0
    %72 = vmatpush1.msra.mxu0 %v46
    %73 = vmatprep.subr.mxu0 0.0
    %74 = vmatpush1.msra.mxu0 %v47
    %75 = vmatprep.subr.mxu0 0.0
    %76 = vmatpush1.msra.mxu0 %v48
    %77 = vmatprep.subr.mxu0 0.0
    %78 = vmatpush1.msra.mxu0 %v49
    %79 = vmatprep.subr.mxu0 0.0
    %80 = vmatpush1.msra.mxu0 %v50
    %81 = vmatprep.subr.mxu0 0.0
    %82 = vmatpush1.msra.mxu0 %v51
    %83 = vmatprep.subr.mxu0 0.0
    %84 = vmatpush1.msra.mxu0 %v52
    %85 = vmatprep.subr.mxu0 0.0
    %86 = vmatpush1.msra.mxu0 %v53
    %87 = vmatprep.subr.mxu0 0.0
    %88 = vmatpush1.msra.mxu0 %v54
    %89 = vmatprep.subr.mxu0 0.0
    %90 = vmatpush1.msra.mxu0 %v55
    %91 = vmatprep.subr.mxu0 0.0
    %92 = vmatpush1.msra.mxu0 %v56
    %93 = vmatprep.subr.mxu0 0.0
    %94 = vmatpush1.msra.mxu0 %v57
    %95 = vmatprep.subr.mxu0 0.0
    %96 = vmatpush1.msra.mxu0 0.0
    %97 = vmatprep.subr.mxu0 0.0
    %98 = vmatpush1.msra.mxu0 0.0
    %99 = vmatprep.subr.mxu0 0.0
    %100 = vmatpush1.msra.mxu0 0.0
    %101 = vmatprep.subr.mxu0 0.0
    %102 = vmatpush1.msra.mxu0 0.0
    %103 = vmatprep.subr.mxu0 0.0
    %104 = vmatpush1.msra.mxu0 0.0
    %105 = vmatprep.subr.mxu0 0.0
    %106 = vmatpush1.msra.mxu0 0.0
    %107 = vmatprep.subr.mxu0 0.0
    %108 = vmatpush1.msra.mxu0 0.0
    %109 = vmatprep.subr.mxu0 0.0
    %110 = vmatpush1.msra.mxu0 0.0
    %111 = vmatprep.subr.mxu0 0.0
    %112 = vmatpush1.msra.mxu0 0.0
    %113 = vmatprep.subr.mxu0 0.0
    %114 = vmatpush1.msra.mxu0 0.0
    %115 = vmatprep.subr.mxu0 0.0
    %116 = vmatpush1.msra.mxu0 0.0
    %117 = vmatprep.subr.mxu0 0.0
    %118 = vmatpush1.msra.mxu0 0.0
    %119 = vmatprep.subr.mxu0 0.0
    %120 = vmatpush1.msra.mxu0 0.0
    %121 = vmatprep.subr.mxu0 0.0
    %122 = vmatpush1.msra.mxu0 0.0
    %123 = vmatprep.subr.mxu0 0.0
    %124 = vmatpush1.msra.mxu0 0.0
    %125 = vmatprep.subr.mxu0 0.0
    %126 = vmatpush1.msra.mxu0 0.0
    %127 = vmatprep.mubr.f32.mxu0 0.0
    %128 = vmatmul.mubr.f32.gmra.mrb[0].mxu0 %v41
    %v129 = vpop.f32.mrb[0].mxu0
    %v130 = vadd.f32 %v62, %v129
    %v131 = vpop.f32.mrb[0].mxu0
    %132 = vdwg.mxu0
    %v133 = vmul.f32 %v41, %v130
    %v134 = vadd.f32 %v41, %v133
    %s135 = scalar_lea.vmem [#allocation5], 128
    %v136 = vld [vmem:[%s135] sm:$0xff]
    %v137 = vld [vmem:[%s135 + $0x8] sm:$0xff]
    %v138 = vld [vmem:[%s135 + $0x10] sm:$0xff]
    %v139 = vld [vmem:[%s135 + $0x18] sm:$0xff]
    %v140 = vld [vmem:[%s135 + $0x20] sm:$0xff]
    %v141 = vld [vmem:[%s135 + $0x28] sm:$0xff]
    %v142 = vld [vmem:[%s135 + $0x30] sm:$0xff]
    %v143 = vld [vmem:[%s135 + $0x38] sm:$0xff]
    %v144 = vld [vmem:[%s135 + $0x40] sm:$0xff]
    %v145 = vld [vmem:[%s135 + $0x48] sm:$0xff]
    %v146 = vld [vmem:[%s135 + $0x50] sm:$0xff]
    %v147 = vld [vmem:[%s135 + $0x58] sm:$0xff]
    %v148 = vld [vmem:[%s135 + $0x60] sm:$0xff]
    %v149 = vld [vmem:[%s135 + $0x68] sm:$0xff]
    %v150 = vld [vmem:[%s135 + $0x70] sm:$0xff]
    %v151 = vld [vmem:[%s135 + $0x78] sm:$0xff]
    %v152 = vld [vmem:[%s2 + $0x1] sm:$0x1]
    %v153 = vlaneseq
    %v154 = vshrl.u32 %v153, 7
    %v155 = vsub.s32 0, %v154
    %v156 = vrot.slane %v152, %v155
    %157 = vmatprep.subr.mxu0 0.0
    %158 = vmatpush1.msra.mxu0 %v136
    %159 = vmatprep.subr.mxu0 0.0
    %160 = vmatpush1.msra.mxu0 %v137
    %161 = vmatprep.subr.mxu0 0.0
    %162 = vmatpush1.msra.mxu0 %v138
    %163 = vmatprep.subr.mxu0 0.0
    %164 = vmatpush1.msra.mxu0 %v139
    %165 = vmatprep.subr.mxu0 0.0
    %166 = vmatpush1.msra.mxu0 %v140
    %167 = vmatprep.subr.mxu0 0.0
    %168 = vmatpush1.msra.mxu0 %v141
    %169 = vmatprep.subr.mxu0 0.0
    %170 = vmatpush1.msra.mxu0 %v142
    %171 = vmatprep.subr.mxu0 0.0
    %172 = vmatpush1.msra.mxu0 %v143
    %173 = vmatprep.subr.mxu0 0.0
    %174 = vmatpush1.msra.mxu0 %v144
    %175 = vmatprep.subr.mxu0 0.0
    %176 = vmatpush1.msra.mxu0 %v145
    %177 = vmatprep.subr.mxu0 0.0
    %178 = vmatpush1.msra.mxu0 %v146
    %179 = vmatprep.subr.mxu0 0.0
    %180 = vmatpush1.msra.mxu0 %v147
    %181 = vmatprep.subr.mxu0 0.0
    %182 = vmatpush1.msra.mxu0 %v148
    %183 = vmatprep.subr.mxu0 0.0
    %184 = vmatpush1.msra.mxu0 %v149
    %185 = vmatprep.subr.mxu0 0.0
    %186 = vmatpush1.msra.mxu0 %v150
    %187 = vmatprep.subr.mxu0 0.0
    %188 = vmatpush1.msra.mxu0 %v151
    %189 = vmatprep.subr.mxu0 0.0
    %190 = vmatpush1.msra.mxu0 0.0
    %191 = vmatprep.subr.mxu0 0.0
    %192 = vmatpush1.msra.mxu0 0.0
    %193 = vmatprep.subr.mxu0 0.0
    %194 = vmatpush1.msra.mxu0 0.0
    %195 = vmatprep.subr.mxu0 0.0
    %196 = vmatpush1.msra.mxu0 0.0
    %197 = vmatprep.subr.mxu0 0.0
    %198 = vmatpush1.msra.mxu0 0.0
    %199 = vmatprep.subr.mxu0 0.0
    %200 = vmatpush1.msra.mxu0 0.0
    %201 = vmatprep.subr.mxu0 0.0
    %202 = vmatpush1.msra.mxu0 0.0
    %203 = vmatprep.subr.mxu0 0.0
    %204 = vmatpush1.msra.mxu0 0.0
    %205 = vmatprep.subr.mxu0 0.0
    %206 = vmatpush1.msra.mxu0 0.0
    %207 = vmatprep.subr.mxu0 0.0
    %208 = vmatpush1.msra.mxu0 0.0
    %209 = vmatprep.subr.mxu0 0.0
    %210 = vmatpush1.msra.mxu0 0.0
    %211 = vmatprep.subr.mxu0 0.0
    %212 = vmatpush1.msra.mxu0 0.0
    %213 = vmatprep.subr.mxu0 0.0
    %214 = vmatpush1.msra.mxu0 0.0
    %215 = vmatprep.subr.mxu0 0.0
    %216 = vmatpush1.msra.mxu0 0.0
    %217 = vmatprep.subr.mxu0 0.0
    %218 = vmatpush1.msra.mxu0 0.0
    %219 = vmatprep.subr.mxu0 0.0
    %220 = vmatpush1.msra.mxu0 0.0
    %221 = vmatprep.mubr.f32.mxu0 0.0
    %222 = vmatmul.mubr.f32.gmra.mrb[0].mxu0 %v134
    %v223 = vpop.f32.mrb[0].mxu0
    %v224 = vadd.f32 %v156, %v223
    %v225 = vpop.f32.mrb[0].mxu0
    %226 = vdwg.mxu0
    %v227 = vmul.f32 %v41, %v224
    %v228 = vadd.f32 %v134, %v227
    %s229 = scalar_lea.vmem [#allocation5], 256
    %v230 = vld [vmem:[%s229] sm:$0xff]
    %v231 = vld [vmem:[%s229 + $0x8] sm:$0xff]
    %v232 = vld [vmem:[%s229 + $0x10] sm:$0xff]
    %v233 = vld [vmem:[%s229 + $0x18] sm:$0xff]
    %v234 = vld [vmem:[%s229 + $0x20] sm:$0xff]
    %v235 = vld [vmem:[%s229 + $0x28] sm:$0xff]
    %v236 = vld [vmem:[%s229 + $0x30] sm:$0xff]
    %v237 = vld [vmem:[%s229 + $0x38] sm:$0xff]
    %v238 = vld [vmem:[%s229 + $0x40] sm:$0xff]
    %v239 = vld [vmem:[%s229 + $0x48] sm:$0xff]
    %v240 = vld [vmem:[%s229 + $0x50] sm:$0xff]
    %v241 = vld [vmem:[%s229 + $0x58] sm:$0xff]
    %v242 = vld [vmem:[%s229 + $0x60] sm:$0xff]
    %v243 = vld [vmem:[%s229 + $0x68] sm:$0xff]
    %v244 = vld [vmem:[%s229 + $0x70] sm:$0xff]
    %v245 = vld [vmem:[%s229 + $0x78] sm:$0xff]
    %v246 = vld [vmem:[%s2 + $0x2] sm:$0x1]
    %v247 = vlaneseq
    %v248 = vshrl.u32 %v247, 7
    %v249 = vsub.s32 0, %v248
    %v250 = vrot.slane %v246, %v249
    %251 = vmatprep.subr.mxu0 0.0
    %252 = vmatpush1.msra.mxu0 %v230
    %253 = vmatprep.subr.mxu0 0.0
    %254 = vmatpush1.msra.mxu0 %v231
    %255 = vmatprep.subr.mxu0 0.0
    %256 = vmatpush1.msra.mxu0 %v232
    %257 = vmatprep.subr.mxu0 0.0
    %258 = vmatpush1.msra.mxu0 %v233
    %259 = vmatprep.subr.mxu0 0.0
    %260 = vmatpush1.msra.mxu0 %v234
    %261 = vmatprep.subr.mxu0 0.0
    %262 = vmatpush1.msra.mxu0 %v235
    %263 = vmatprep.subr.mxu0 0.0
    %264 = vmatpush1.msra.mxu0 %v236
    %265 = vmatprep.subr.mxu0 0.0
    %266 = vmatpush1.msra.mxu0 %v237
    %267 = vmatprep.subr.mxu0 0.0
    %268 = vmatpush1.msra.mxu0 %v238
    %269 = vmatprep.subr.mxu0 0.0
    %270 = vmatpush1.msra.mxu0 %v239
    %271 = vmatprep.subr.mxu0 0.0
    %272 = vmatpush1.msra.mxu0 %v240
    %273 = vmatprep.subr.mxu0 0.0
    %274 = vmatpush1.msra.mxu0 %v241
    %275 = vmatprep.subr.mxu0 0.0
    %276 = vmatpush1.msra.mxu0 %v242
    %277 = vmatprep.subr.mxu0 0.0
    %278 = vmatpush1.msra.mxu0 %v243
    %279 = vmatprep.subr.mxu0 0.0
    %280 = vmatpush1.msra.mxu0 %v244
    %281 = vmatprep.subr.mxu0 0.0
    %282 = vmatpush1.msra.mxu0 %v245
    %283 = vmatprep.subr.mxu0 0.0
    %284 = vmatpush1.msra.mxu0 0.0
    %285 = vmatprep.subr.mxu0 0.0
    %286 = vmatpush1.msra.mxu0 0.0
    %287 = vmatprep.subr.mxu0 0.0
    %288 = vmatpush1.msra.mxu0 0.0
    %289 = vmatprep.subr.mxu0 0.0
    %290 = vmatpush1.msra.mxu0 0.0
    %291 = vmatprep.subr.mxu0 0.0
    %292 = vmatpush1.msra.mxu0 0.0
    %293 = vmatprep.subr.mxu0 0.0
    %294 = vmatpush1.msra.mxu0 0.0
    %295 = vmatprep.subr.mxu0 0.0
    %296 = vmatpush1.msra.mxu0 0.0
    %297 = vmatprep.subr.mxu0 0.0
    %298 = vmatpush1.msra.mxu0 0.0
    %299 = vmatprep.subr.mxu0 0.0
    %300 = vmatpush1.msra.mxu0 0.0
    %301 = vmatprep.subr.mxu0 0.0
    %302 = vmatpush1.msra.mxu0 0.0
    %303 = vmatprep.subr.mxu0 0.0
    %304 = vmatpush1.msra.mxu0 0.0
    %305 = vmatprep.subr.mxu0 0.0
    %306 = vmatpush1.msra.mxu0 0.0
    %307 = vmatprep.subr.mxu0 0.0
    %308 = vmatpush1.msra.mxu0 0.0
    %309 = vmatprep.subr.mxu0 0.0
    %310 = vmatpush1.msra.mxu0 0.0
    %311 = vmatprep.subr.mxu0 0.0
    %312 = vmatpush1.msra.mxu0 0.0
    %313 = vmatprep.subr.mxu0 0.0
    %314 = vmatpush1.msra.mxu0 0.0
    %315 = vmatprep.mubr.f32.mxu0 0.0
    %316 = vmatmul.mubr.f32.gmra.mrb[0].mxu0 %v228
    %v317 = vpop.f32.mrb[0].mxu0
    %v318 = vadd.f32 %v250, %v317
    %v319 = vpop.f32.mrb[0].mxu0
    %320 = vdwg.mxu0
    %v321 = vmul.f32 %v41, %v318
    %v322 = vadd.f32 %v228, %v321
    %323 = vst [vmem:[#allocation7] sm:$0xff] %v322
    // Predicated region
    $region22: #{tpu_custom_call.1} parent=1 // pred_check
      _
    $region23: #{tpu_custom_call.1} parent=1 // pred_check_branch
      %325 = sbr.rel (0) target = $region25
    $region24: #{tpu_custom_call.1} parent=1 // pred_region
      %s327 = ssub.s32 128, 128
      %328 = vsyncadd [#allocation4], %s327
      %s330 = sshll.u32 [#allocation7], 4
      %s331 = int_to_ptr.vmem [resolvable:$true] %s330
      %333 = dma.vmem_to_hbm [thread:$0]  %s331, 128, %s3, [#allocation4]
    $region25: #{tpu_custom_call.1} parent=1 // pred_fallthru
      _
    // Predicated region
    $region26: #{tpu_custom_call.1} parent=1 // pred_check
      _
    $region27: #{tpu_custom_call.1} parent=1 // pred_check_branch
      %335 = sbr.rel (0) target = $region29
    $region28: #{tpu_custom_call.1} parent=1 // pred_region
      %336 = dma.done [#allocation4], 128
    $region29: #{tpu_custom_call.1} parent=1 // pred_fallthru
      _
    %337 = vsyncpa [#allocation3], 1
    %338 = vsyncpa [#allocation6], 1
    %339 = vsyncpa [#allocation4], 1

</llo_original>
